<compile_context>
chip_gen: v5e
topology: v5e:2x2
jax: 0.10.0
libtpu: 0.0.40
codegen_flags: <defaults>
</compile_context>

<pallas_src>
import jax
import jax.numpy as jnp
from jax import lax
from jax.experimental import pallas as pl
from jax.experimental.pallas import tpu as pltpu


def _round_up(x: int, m: int) -> int:
    return ((x + m - 1) // m) * m


# TODO(synk): the frozen backbone `self.model` is an arbitrary nn.Module in the
# reference; its conv trunk is stubbed here as a global average pool, and its final
# frozen linear projection is fused into the Pallas kernel below.
def stub_backbone_pool(images):
    # images: [B, C, H, W] -> global average pool -> [B, C]
    return jnp.mean(images, axis=(2, 3))


def probe_kernel(pooled_ref, proj_ref, w_ref, b_ref, o_ref):
    # pooled_ref: [tb, C] bf16   pooled backbone activations
    # proj_ref:   [C, F]  bf16   frozen backbone projection (grid-invariant)
    # w_ref:      [F, F]  bf16   mapper weight, PyTorch layout (y = x @ W.T + b)
    # b_ref:      [1, F]  f32    mapper bias (grid-invariant)
    # o_ref:      [tb, F] f32    L2-normalized output
    # Frozen backbone projection; f32 accumulation plays the role of `.float().detach()`.
    feats = jnp.dot(pooled_ref[...], proj_ref[...],
                    preferred_element_type=jnp.float32)
    # Mapper Linear: contract on the last dims of both operands (x @ W.T), so the
    # transpose is never materialized in HBM; bf16 MXU inputs, f32 accumulation.
    y = lax.dot_general(
        feats.astype(jnp.bfloat16), w_ref[...],
        dimension_numbers=(((1,), (1,)), ((), ())),
        preferred_element_type=jnp.float32)
    y = y + b_ref[...]
    # F.normalize(dim=-1): x / max(||x||, 1e-12)  ==  x * rsqrt(max(||x||^2, 1e-24)).
    # rsqrt runs on the EUP slot, off the VPU critical path.
    sq = jnp.sum(y * y, axis=-1, keepdims=True)
    o_ref[...] = y * lax.rsqrt(jnp.maximum(sq, 1e-24))


def linear_probe_forward(images, backbone_proj, mapper_w, mapper_b, *, tb=256):
    pooled = stub_backbone_pool(images)                      # [B, C] f32
    B, C = pooled.shape
    F = mapper_w.shape[0]

    # Batch tile: large enough to feed the 128/256-wide MXU, sublane-aligned, and
    # split so the grid keeps >= 2 steps (megacore sharding on v7x) when possible.
    b8 = _round_up(B, 8)
    tb_eff = min(tb, b8)
    if b8 // tb_eff < 2 and tb_eff > 8:
        tb_eff = _round_up(pl.cdiv(b8, 2), 8)
    B_pad = _round_up(B, tb_eff)

    pooled_bf16 = pooled.astype(jnp.bfloat16)
    if B_pad != B:
        pooled_bf16 = jnp.pad(pooled_bf16, ((0, B_pad - B), (0, 0)))

    proj_bf16 = backbone_proj.astype(jnp.bfloat16)           # [C, F]
    w_bf16 = mapper_w.astype(jnp.bfloat16)                   # [F, F], no transpose
    bias = mapper_b.reshape(1, F).astype(jnp.float32)        # [1, F]

    grid = (B_pad // tb_eff,)

    def _call(single_buffer_invariants):
        inv_kwargs = (dict(pipeline_mode=pl.Buffered(1))
                      if single_buffer_invariants else {})
        return pl.pallas_call(
            probe_kernel,
            out_shape=jax.ShapeDtypeStruct((B_pad, F), jnp.float32),
            grid_spec=pltpu.PrefetchScalarGridSpec(
                num_scalar_prefetch=0,
                grid=grid,
                in_specs=[
                    pl.BlockSpec((tb_eff, C), lambda i: (i, 0)),
                    pl.BlockSpec((C, F), lambda i: (0, 0), **inv_kwargs),
                    pl.BlockSpec((F, F), lambda i: (0, 0), **inv_kwargs),
                    pl.BlockSpec((1, F), lambda i: (0, 0), **inv_kwargs),
                ],
                out_specs=pl.BlockSpec((tb_eff, F), lambda i: (i, 0)),
            ),
            compiler_params=pltpu.CompilerParams(
                dimension_semantics=("parallel",),
                vmem_limit_bytes=64 * 1024 * 1024,
            ),
        )(pooled_bf16, proj_bf16, w_bf16, bias)

    try:
        # Grid-invariant proj / weight / bias blocks never change across the grid:
        # single-buffer them to halve their VMEM footprint (matters on v7x's 64 MiB).
        out = _call(True)
    except Exception:
        # TODO(synk): pipeline_mode=pl.Buffered(1) unsupported on this JAX build;
        # fall back to default double-buffering of the grid-invariant blocks.
        out = _call(False)

    return out[:B] if B_pad != B else out


if __name__ == "__main__":
    key = jax.random.PRNGKey(0)
    k_img, k_proj = jax.random.split(key)

    B, C, H, W = 8, 4, 16, 16
    feat_dim = 128

    images = jax.random.normal(k_img, (B, C, H, W), dtype=jnp.float32)

    # Frozen backbone stub params (deterministic).
    backbone_proj = jax.random.normal(k_proj, (C, feat_dim), dtype=jnp.float32) * 0.1

    # Mapper params exactly as in __init__: weight = eye(feat_dim), bias = 0.
    mapper_w = jnp.eye(feat_dim, dtype=jnp.float32)
    mapper_b = jnp.zeros((feat_dim,), dtype=jnp.float32)

    out = linear_probe_forward(images, backbone_proj, mapper_w, mapper_b)
    out = jax.block_until_ready(out)

    # Reference check in plain f32 JAX (same semantics as the PyTorch forward).
    feats_ref = jnp.mean(images, axis=(2, 3)) @ backbone_proj
    y_ref = feats_ref @ mapper_w.T + mapper_b
    n_ref = jnp.maximum(jnp.linalg.norm(y_ref, axis=-1, keepdims=True), 1e-12)
    y_ref = y_ref / n_ref

    assert out.shape == (B, feat_dim)
    # bf16 MXU inputs (f32 accumulation) -> loosened tolerance vs the f32 reference.
    assert jnp.allclose(out, y_ref, atol=2e-2, rtol=2e-2)

    print("KERNEL_OK")
</pallas_src>

<mosaic_0001>
module attributes {stable_mosaic.version = 11 : i64} {
  func.func @probe_kernel(%arg0: i32, %arg1: memref<8x4xbf16, #tpu.memory_space<vmem>>, %arg2: memref<4x128xbf16, #tpu.memory_space<vmem>>, %arg3: memref<128x128xbf16, #tpu.memory_space<vmem>>, %arg4: memref<1x128xf32, #tpu.memory_space<vmem>>, %arg5: memref<8x128xf32, #tpu.memory_space<vmem>>) attributes {dimension_semantics = [#tpu.dimension_semantics<parallel>], iteration_bounds = array<i64: 1>, scalar_prefetch = 0 : i64, scratch_operands = 0 : i64, tpu.core_type = #tpu.core_type<tc>, window_params = [{transform_indices = @transform_0, window_bounds = array<i64: 8, 4>}, {pipeline_mode = #tpu.pipeline_mode<synchronous>, transform_indices = @transform_1, window_bounds = array<i64: 4, 128>}, {pipeline_mode = #tpu.pipeline_mode<synchronous>, transform_indices = @transform_2, window_bounds = array<i64: 128, 128>}, {pipeline_mode = #tpu.pipeline_mode<synchronous>, transform_indices = @transform_3, window_bounds = array<i64: 1, 128>}, {transform_indices = @transform_4, window_bounds = array<i64: 8, 128>}]} {
    %c0 = arith.constant 0 : index
    %c0_0 = arith.constant 0 : index
    %0 = vector.load %arg1[%c0, %c0_0] : memref<8x4xbf16, #tpu.memory_space<vmem>>, vector<8x4xbf16>
    %c0_1 = arith.constant 0 : index
    %c0_2 = arith.constant 0 : index
    %1 = vector.load %arg2[%c0_1, %c0_2] : memref<4x128xbf16, #tpu.memory_space<vmem>>, vector<4x128xbf16>
    %cst = arith.constant dense<0.000000e+00> : vector<8x128xf32>
    %2 = tpu.matmul %0, %1, %cst {dimension_numbers = #tpu.dot_dimension_numbers<[1], [0], [0], [1], [0, 0, 1, 1], [], []>} : vector<8x4xbf16>, vector<4x128xbf16>, vector<8x128xf32> -> vector<8x128xf32>
    %3 = arith.truncf %2 : vector<8x128xf32> to vector<8x128xbf16>
    %c0_3 = arith.constant 0 : index
    %c0_4 = arith.constant 0 : index
    %4 = vector.load %arg3[%c0_3, %c0_4] : memref<128x128xbf16, #tpu.memory_space<vmem>>, vector<128x128xbf16>
    %cst_5 = arith.constant dense<0.000000e+00> : vector<8x128xf32>
    %5 = tpu.matmul %3, %4, %cst_5 {dimension_numbers = #tpu.dot_dimension_numbers<[1], [1], [0], [0], [0, 0, 1, 0], [], []>} : vector<8x128xbf16>, vector<128x128xbf16>, vector<8x128xf32> -> vector<8x128xf32>
    %c0_6 = arith.constant 0 : index
    %c0_7 = arith.constant 0 : index
    %6 = vector.load %arg4[%c0_6, %c0_7] : memref<1x128xf32, #tpu.memory_space<vmem>>, vector<1x128xf32>
    %7 = vector.broadcast %6 : vector<1x128xf32> to vector<8x128xf32>
    %8 = arith.addf %5, %7 : vector<8x128xf32>
    %9 = arith.mulf %8, %8 : vector<8x128xf32>
    %cst_8 = arith.constant dense<0.000000e+00> : vector<8xf32>
    %10 = vector.multi_reduction <add>, %9, %cst_8 [1] : vector<8x128xf32> to vector<8xf32>
    %11 = vector.shape_cast %10 : vector<8xf32> to vector<8x1xf32>
    %cst_9 = arith.constant 1.000000e-24 : f32
    %12 = vector.broadcast %cst_9 : f32 to vector<8x1xf32>
    %13 = arith.maximumf %11, %12 : vector<8x1xf32>
    %14 = math.rsqrt %13 : vector<8x1xf32>
    %15 = vector.broadcast %14 : vector<8x1xf32> to vector<8x128xf32>
    %16 = arith.mulf %8, %15 : vector<8x128xf32>
    %c0_10 = arith.constant 0 : index
    %c0_11 = arith.constant 0 : index
    %17 = vector.load %arg5[%c0_10, %c0_11] : memref<8x128xf32, #tpu.memory_space<vmem>>, vector<8x128xf32>
    tpu.vector_store %arg5[%c0_10, %c0_11], %16 {strides = array<i32>} : memref<8x128xf32, #tpu.memory_space<vmem>>, vector<8x128xf32>,
    return
  }
  func.func @transform_0(%arg0: i32) -> (i32, i32) {
    %c0_i32 = arith.constant 0 : i32
    %c0_i32_0 = arith.constant 0 : i32
    return %arg0, %c0_i32 : i32, i32
  }
  func.func @transform_1(%arg0: i32) -> (i32, i32) {
    %c0_i32 = arith.constant 0 : i32
    %c0_i32_0 = arith.constant 0 : i32
    %c0_i32_1 = arith.constant 0 : i32
    return %c0_i32, %c0_i32_0 : i32, i32
  }
  func.func @transform_2(%arg0: i32) -> (i32, i32) {
    %c0_i32 = arith.constant 0 : i32
    %c0_i32_0 = arith.constant 0 : i32
    %c0_i32_1 = arith.constant 0 : i32
    return %c0_i32, %c0_i32_0 : i32, i32
  }
  func.func @transform_3(%arg0: i32) -> (i32, i32) {
    %c0_i32 = arith.constant 0 : i32
    %c0_i32_0 = arith.constant 0 : i32
    %c0_i32_1 = arith.constant 0 : i32
    return %c0_i32, %c0_i32_0 : i32, i32
  }
  func.func @transform_4(%arg0: i32) -> (i32, i32) {
    %c0_i32 = arith.constant 0 : i32
    %c0_i32_0 = arith.constant 0 : i32
    return %arg0, %c0_i32 : i32, i32
  }
}

module attributes {stable_mosaic.version = 11 : i64} {
  func.func @probe_kernel(%arg0: i32, %arg1: memref<8x4xbf16, #tpu.memory_space<vmem>>, %arg2: memref<4x128xbf16, #tpu.memory_space<vmem>>, %arg3: memref<128x128xbf16, #tpu.memory_space<vmem>>, %arg4: memref<1x128xf32, #tpu.memory_space<vmem>>, %arg5: memref<8x128xf32, #tpu.memory_space<vmem>>) attributes {dimension_semantics = [#tpu.dimension_semantics<parallel>], iteration_bounds = array<i64: 1>, scalar_prefetch = 0 : i64, scratch_operands = 0 : i64, tpu.core_type = #tpu.core_type<tc>, window_params = [{transform_indices = @transform_0, window_bounds = array<i64: 8, 4>}, {pipeline_mode = #tpu.pipeline_mode<synchronous>, transform_indices = @transform_1, window_bounds = array<i64: 4, 128>}, {pipeline_mode = #tpu.pipeline_mode<synchronous>, transform_indices = @transform_2, window_bounds = array<i64: 128, 128>}, {pipeline_mode = #tpu.pipeline_mode<synchronous>, transform_indices = @transform_3, window_bounds = array<i64: 1, 128>}, {transform_indices = @transform_4, window_bounds = array<i64: 8, 128>}]} {
    %c0 = arith.constant 0 : index
    %c0_0 = arith.constant 0 : index
    %0 = vector.load %arg1[%c0, %c0_0] : memref<8x4xbf16, #tpu.memory_space<vmem>>, vector<8x4xbf16>
    %c0_1 = arith.constant 0 : index
    %c0_2 = arith.constant 0 : index
    %1 = vector.load %arg2[%c0_1, %c0_2] : memref<4x128xbf16, #tpu.memory_space<vmem>>, vector<4x128xbf16>
    %cst = arith.constant dense<0.000000e+00> : vector<8x128xf32>
    %2 = tpu.matmul %0, %1, %cst {dimension_numbers = #tpu.dot_dimension_numbers<[1], [0], [0], [1], [0, 0, 1, 1], [], []>} : vector<8x4xbf16>, vector<4x128xbf16>, vector<8x128xf32> -> vector<8x128xf32>
    %3 = arith.truncf %2 : vector<8x128xf32> to vector<8x128xbf16>
    %c0_3 = arith.constant 0 : index
    %c0_4 = arith.constant 0 : index
    %4 = vector.load %arg3[%c0_3, %c0_4] : memref<128x128xbf16, #tpu.memory_space<vmem>>, vector<128x128xbf16>
    %cst_5 = arith.constant dense<0.000000e+00> : vector<8x128xf32>
    %5 = tpu.matmul %3, %4, %cst_5 {dimension_numbers = #tpu.dot_dimension_numbers<[1], [1], [0], [0], [0, 0, 1, 0], [], []>} : vector<8x128xbf16>, vector<128x128xbf16>, vector<8x128xf32> -> vector<8x128xf32>
    %c0_6 = arith.constant 0 : index
    %c0_7 = arith.constant 0 : index
    %6 = vector.load %arg4[%c0_6, %c0_7] : memref<1x128xf32, #tpu.memory_space<vmem>>, vector<1x128xf32>
    %7 = vector.broadcast %6 : vector<1x128xf32> to vector<8x128xf32>
    %8 = arith.addf %5, %7 : vector<8x128xf32>
    %9 = arith.mulf %8, %8 : vector<8x128xf32>
    %cst_8 = arith.constant dense<0.000000e+00> : vector<8xf32>
    %10 = vector.multi_reduction <add>, %9, %cst_8 [1] : vector<8x128xf32> to vector<8xf32>
    %11 = vector.shape_cast %10 : vector<8xf32> to vector<8x1xf32>
    %cst_9 = arith.constant 1.000000e-24 : f32
    %12 = vector.broadcast %cst_9 : f32 to vector<8x1xf32>
    %13 = arith.maximumf %11, %12 : vector<8x1xf32>
    %14 = math.rsqrt %13 : vector<8x1xf32>
    %15 = vector.broadcast %14 : vector<8x1xf32> to vector<8x128xf32>
    %16 = arith.mulf %8, %15 : vector<8x128xf32>
    %c0_10 = arith.constant 0 : index
    %c0_11 = arith.constant 0 : index
    %17 = vector.load %arg5[%c0_10, %c0_11] : memref<8x128xf32, #tpu.memory_space<vmem>>, vector<8x128xf32>
    tpu.vector_store %arg5[%c0_10, %c0_11], %16 {strides = array<i32>} : memref<8x128xf32, #tpu.memory_space<vmem>>, vector<8x128xf32>,
    return
  }
  func.func @transform_0(%arg0: i32) -> (i32, i32) {
    %c0_i32 = arith.constant 0 : i32
    %c0_i32_0 = arith.constant 0 : i32
    return %arg0, %c0_i32 : i32, i32
  }
  func.func @transform_1(%arg0: i32) -> (i32, i32) {
    %c0_i32 = arith.constant 0 : i32
    %c0_i32_0 = arith.constant 0 : i32
    %c0_i32_1 = arith.constant 0 : i32
    return %c0_i32, %c0_i32_0 : i32, i32
  }
  func.func @transform_2(%arg0: i32) -> (i32, i32) {
    %c0_i32 = arith.constant 0 : i32
    %c0_i32_0 = arith.constant 0 : i32
    %c0_i32_1 = arith.constant 0 : i32
    return %c0_i32, %c0_i32_0 : i32, i32
  }
  func.func @transform_3(%arg0: i32) -> (i32, i32) {
    %c0_i32 = arith.constant 0 : i32
    %c0_i32_0 = arith.constant 0 : i32
    %c0_i32_1 = arith.constant 0 : i32
    return %c0_i32, %c0_i32_0 : i32, i32
  }
  func.func @transform_4(%arg0: i32) -> (i32, i32) {
    %c0_i32 = arith.constant 0 : i32
    %c0_i32_0 = arith.constant 0 : i32
    return %arg0, %c0_i32 : i32, i32
  }
}

</mosaic_0001>

<llo_original>
// kernel: tpu_custom_call.1
$region0: #{tpu_custom_call.1}
  #allocation0 [shape = 'u32[]', space=smem, size = 0x4, offset = 0x4, fixed_abs, tag = 'smem constant byte address 0x4 - core index']
  #allocation1 [shape = 'u32[72,128]{1,0:T(1,128)}', space=vmem, size = 0x9000, scoped, tag = 'internal scratch']
  %s0 = inlined_call_operand.vmem [shape: bf16[8,4], index: 0, kind: input, shape index: {}]
  %s1 = inlined_call_operand.vmem [shape: bf16[4,128], index: 1, kind: input, shape index: {}]
  %s2 = inlined_call_operand.hbm [shape: bf16[128,128], index: 2, kind: input, shape index: {}]
  %s3 = inlined_call_operand.vmem [shape: f32[1,128], index: 3, kind: input, shape index: {}]
  %s4 = inlined_call_operand.hbm [shape: f32[8,128], index: 4, kind: output, shape index: {}]
  %s5 = sld [smem:[#allocation0]]
  $region30: #{tpu_custom_call.1} parent=0
    _
  %s7 = ssub.s32 1, %s5
  %s8 = scalar_select 0, %s7, %s5
  $region1: #{tpu_custom_call.1} parent=0
    #allocation2 [shape = 'u8[32768]{0}', space=vmem, size = 0x8000, scoped, tag = 'input window, operand 2, single buffered']
    #allocation3 [shape = 's32[1]{0}', space=sflag, size = 0x4, scoped, tag = 'scoped memory for tpu_custom_call.1']
    #allocation4 [shape = 's32[1]{0}', space=sflag, size = 0x4, scoped, tag = 'scoped memory for tpu_custom_call.1']
    #allocation5 [shape = 'u8[4096]{0}', space=vmem, size = 0x1000, scoped, tag = 'output window, operand 0, single buffered']
    %9 = vsyncpa [#allocation3], 0
    %10 = vsyncpa [#allocation4], 0
    // Predicated region
    $region2: #{tpu_custom_call.1} parent=1 // pred_check
      _
    $region3: #{tpu_custom_call.1} parent=1 // pred_check_branch
      %12 = sbr.rel (0) target = $region5
    $region4: #{tpu_custom_call.1} parent=1 // pred_region
      _
    $region5: #{tpu_custom_call.1} parent=1 // pred_fallthru
      _
    // Predicated region
    $region6: #{tpu_custom_call.1} parent=1 // pred_check
      _
    $region7: #{tpu_custom_call.1} parent=1 // pred_check_branch
      %14 = sbr.rel (0) target = $region9
    $region8: #{tpu_custom_call.1} parent=1 // pred_region
      _
    $region9: #{tpu_custom_call.1} parent=1 // pred_fallthru
      _
    // Predicated region
    $region10: #{tpu_custom_call.1} parent=1 // pred_check
      _
    $region11: #{tpu_custom_call.1} parent=1 // pred_check_branch
      %16 = sbr.rel (0) target = $region13
    $region12: #{tpu_custom_call.1} parent=1 // pred_region
      %18 = vsyncadd [#allocation3], 0
      %s19 = sshll.u32 %s2, 4
      %s20 = int_to_ptr.hbm [resolvable:$true] %s19
      %s21 = sshll.u32 [#allocation2], 4
      %s22 = int_to_ptr.vmem [resolvable:$true] %s21
      %27 = dma.hbm_to_vmem [thread:$0]  %s20, 1024, %s22, [#allocation3], 64, 64, 4
    $region13: #{tpu_custom_call.1} parent=1 // pred_fallthru
      _
    // Predicated region
    $region14: #{tpu_custom_call.1} parent=1 // pred_check
      _
    $region15: #{tpu_custom_call.1} parent=1 // pred_check_branch
      %29 = sbr.rel (0) target = $region17
    $region16: #{tpu_custom_call.1} parent=1 // pred_region
      _
    $region17: #{tpu_custom_call.1} parent=1 // pred_fallthru
      _
    // Predicated region
    $region18: #{tpu_custom_call.1} parent=1 // pred_check
      _
    $region19: #{tpu_custom_call.1} parent=1 // pred_check_branch
      %31 = sbr.rel (0) target = $region21
    $region20: #{tpu_custom_call.1} parent=1 // pred_region
      %33 = dma.done [#allocation3], 1024
    $region21: #{tpu_custom_call.1} parent=1 // pred_fallthru
      _
    %v35 = vld [vmem:[%s0] sm:$0xf]
    %v36 = vld [vmem:[%s1] sm:$0x3]
    %vm37 = vcmask 31744
    %v39 = vsel %vm37, %v35, 0
    %vm41 = vcmask 1041408
    %v43 = vsel %vm41, %v36, 0
    %45 = vmatpush.bf16.msra.mxu0 0
    %46 = vmatpush.bf16.msra.mxu0 0
    %47 = vmatpush.bf16.msra.mxu0 0
    %48 = vmatpush.bf16.msra.mxu0 0
    %49 = vmatpush.bf16.msra.mxu0 0
    %50 = vmatpush.bf16.msra.mxu0 0
    %51 = vmatpush.bf16.msra.mxu0 0
    %52 = vmatpush.bf16.msra.mxu0 %v43
    %53 = vmatmul.bf16.gmra.mxu0 %v39
    %v54 = vpop.f32.mrf.mxu0
    %v55 = vadd.f32 0.0, %v54
    %v56 = vpop.f32.mrf.mxu0
    %57 = vdwg.mxu0
    %v58 = vpack.c.bf16 %v55, %v55
    %v59 = vld [vmem:[#allocation2] sm:$0xf]
    %v60 = vld [vmem:[#allocation2 + $0x4] sm:$0xf]
    %v61 = vld [vmem:[#allocation2 + $0x8] sm:$0xf]
    %v62 = vld [vmem:[#allocation2 + $0xc] sm:$0xf]
    %v63 = vld [vmem:[#allocation2 + $0x10] sm:$0xf]
    %v64 = vld [vmem:[#allocation2 + $0x14] sm:$0xf]
    %v65 = vld [vmem:[#allocation2 + $0x18] sm:$0xf]
    %v66 = vld [vmem:[#allocation2 + $0x1c] sm:$0xf]
    %v67 = vld [vmem:[#allocation2 + $0x20] sm:$0xf]
    %v68 = vld [vmem:[#allocation2 + $0x24] sm:$0xf]
    %v69 = vld [vmem:[#allocation2 + $0x28] sm:$0xf]
    %v70 = vld [vmem:[#allocation2 + $0x2c] sm:$0xf]
    %v71 = vld [vmem:[#allocation2 + $0x30] sm:$0xf]
    %v72 = vld [vmem:[#allocation2 + $0x34] sm:$0xf]
    %v73 = vld [vmem:[#allocation2 + $0x38] sm:$0xf]
    %v74 = vld [vmem:[#allocation2 + $0x3c] sm:$0xf]
    %v75 = vld [vmem:[%s3] sm:$0x1]
    %v77 = vperm.slane %v75, 0
    %v95 = vunpack.c.l.b16 %v59
    %v96 = vunpack.c.l.b16 %v60
    %v97 = vunpack.c.l.b16 %v61
    %v98 = vunpack.c.l.b16 %v62
    %v99 = vunpack.c.l.b16 %v63
    %v100 = vunpack.c.l.b16 %v64
    %v101 = vunpack.c.l.b16 %v65
    %v102 = vunpack.c.l.b16 %v66
    %v103 = vunpack.c.l.b16 %v67
    %v104 = vunpack.c.l.b16 %v68
    %v105 = vunpack.c.l.b16 %v69
    %v106 = vunpack.c.l.b16 %v70
    %v107 = vunpack.c.l.b16 %v71
    %v108 = vunpack.c.l.b16 %v72
    %v109 = vunpack.c.l.b16 %v73
    %v110 = vunpack.c.l.b16 %v74
    %v111 = vpack.c.b16 %v96, %v95
    %v112 = vpack.c.b16 %v98, %v97
    %v113 = vpack.c.b16 %v100, %v99
    %v114 = vpack.c.b16 %v102, %v101
    %v115 = vpack.c.b16 %v104, %v103
    %v116 = vpack.c.b16 %v106, %v105
    %v117 = vpack.c.b16 %v108, %v107
    %v118 = vpack.c.b16 %v110, %v109
    %127 = vmatpush.bf16.xpose.msra.mxu0 %v118
    %128 = vmatpush.bf16.xpose.msra.mxu0 %v117
    %129 = vmatpush.bf16.xpose.msra.mxu0 %v116
    %130 = vmatpush.bf16.xpose.msra.mxu0 %v115
    %131 = vmatpush.bf16.xpose.msra.mxu0 %v114
    %132 = vmatpush.bf16.xpose.msra.mxu0 %v113
    %133 = vmatpush.bf16.xpose.msra.mxu0 %v112
    %134 = vmatpush.bf16.xpose.msra.mxu0 %v111
    %135 = vmatmul.bf16.gmra.mxu0 %v58
    %v136 = vpop.f32.mrf.mxu0
    %v137 = vadd.f32 %v77, %v136
    %v138 = vpop.f32.mrf.mxu0
    %139 = vdwg.mxu0
    %v140 = vmul.f32 %v137, %v137
    %141 = vadd.xlane.f32.xlu0 %v140
    %v142 = vpop.xlane.xlu0 %141
    %v143 = vmax.f32 %v142, 1e-24
    %v144 = vrsqrt.pop %v143
    %v145 = vmul.f32 %v144, %v143
    %v146 = vmul.f32 %v145, %v144
    %v147 = vmul.f32 0.5, %v146
    %v148 = vsub.f32 1.5, %v147
    %v149 = vmul.f32 %v144, %v148
    %vm150 = vweird.f32 %v143
    %vm151 = vweird.f32 %v144
    %vm152 = vmor %vm150, %vm151
    %v153 = vsel %vm152, %v144, %v149
    %v154 = vmul.f32 %v137, %v153
    %155 = vst [vmem:[#allocation5] sm:$0xff] %v154
    // Predicated region
    $region22: #{tpu_custom_call.1} parent=1 // pred_check
      _
    $region23: #{tpu_custom_call.1} parent=1 // pred_check_branch
      %157 = sbr.rel (0) target = $region25
    $region24: #{tpu_custom_call.1} parent=1 // pred_region
      %159 = vsyncadd [#allocation4], 0
      %s161 = sshll.u32 [#allocation5], 4
      %s162 = int_to_ptr.vmem [resolvable:$true] %s161
      %s163 = sshll.u32 %s4, 4
      %s164 = int_to_ptr.hbm [resolvable:$true] %s163
      %166 = dma.vmem_to_hbm [thread:$0]  %s162, 128, %s164, [#allocation4]
    $region25: #{tpu_custom_call.1} parent=1 // pred_fallthru
      _
    // Predicated region
    $region26: #{tpu_custom_call.1} parent=1 // pred_check
      _
    $region27: #{tpu_custom_call.1} parent=1 // pred_check_branch
      %168 = sbr.rel (0) target = $region29
    $region28: #{tpu_custom_call.1} parent=1 // pred_region
      %170 = dma.done [#allocation4], 128
    $region29: #{tpu_custom_call.1} parent=1 // pred_fallthru
      _
    %171 = vsyncpa [#allocation3], 1
    %172 = vsyncpa [#allocation4], 1

// kernel: tpu_custom_call.1
$region0: #{tpu_custom_call.1}
  #allocation0 [shape = 'u32[]', space=smem, size = 0x4, offset = 0x4, fixed_abs, tag = 'smem constant byte address 0x4 - core index']
  #allocation1 [shape = 'u32[72,128]{1,0:T(1,128)}', space=vmem, size = 0x9000, scoped, tag = 'internal scratch']
  %s0 = inlined_call_operand.vmem [shape: bf16[8,4], index: 0, kind: input, shape index: {}]
  %s1 = inlined_call_operand.vmem [shape: bf16[4,128], index: 1, kind: input, shape index: {}]
  %s2 = inlined_call_operand.hbm [shape: bf16[128,128], index: 2, kind: input, shape index: {}]
  %s3 = inlined_call_operand.vmem [shape: f32[1,128], index: 3, kind: input, shape index: {}]
  %s4 = inlined_call_operand.hbm [shape: f32[8,128], index: 4, kind: output, shape index: {}]
  %s5 = sld [smem:[#allocation0]]
  $region30: #{tpu_custom_call.1} parent=0
    _
  %s7 = ssub.s32 1, %s5
  %s8 = scalar_select 0, %s7, %s5
  $region1: #{tpu_custom_call.1} parent=0
    #allocation2 [shape = 'u8[32768]{0}', space=vmem, size = 0x8000, scoped, tag = 'input window, operand 2, single buffered']
    #allocation3 [shape = 's32[1]{0}', space=sflag, size = 0x4, scoped, tag = 'scoped memory for tpu_custom_call.1']
    #allocation4 [shape = 's32[1]{0}', space=sflag, size = 0x4, scoped, tag = 'scoped memory for tpu_custom_call.1']
    #allocation5 [shape = 'u8[4096]{0}', space=vmem, size = 0x1000, scoped, tag = 'output window, operand 0, single buffered']
    %9 = vsyncpa [#allocation3], 0
    %10 = vsyncpa [#allocation4], 0
    // Predicated region
    $region2: #{tpu_custom_call.1} parent=1 // pred_check
      _
    $region3: #{tpu_custom_call.1} parent=1 // pred_check_branch
      %12 = sbr.rel (0) target = $region5
    $region4: #{tpu_custom_call.1} parent=1 // pred_region
      _
    $region5: #{tpu_custom_call.1} parent=1 // pred_fallthru
      _
    // Predicated region
    $region6: #{tpu_custom_call.1} parent=1 // pred_check
      _
    $region7: #{tpu_custom_call.1} parent=1 // pred_check_branch
      %14 = sbr.rel (0) target = $region9
    $region8: #{tpu_custom_call.1} parent=1 // pred_region
      _
    $region9: #{tpu_custom_call.1} parent=1 // pred_fallthru
      _
    // Predicated region
    $region10: #{tpu_custom_call.1} parent=1 // pred_check
      _
    $region11: #{tpu_custom_call.1} parent=1 // pred_check_branch
      %16 = sbr.rel (0) target = $region13
    $region12: #{tpu_custom_call.1} parent=1 // pred_region
      %18 = vsyncadd [#allocation3], 0
      %s19 = sshll.u32 %s2, 4
      %s20 = int_to_ptr.hbm [resolvable:$true] %s19
      %s21 = sshll.u32 [#allocation2], 4
      %s22 = int_to_ptr.vmem [resolvable:$true] %s21
      %27 = dma.hbm_to_vmem [thread:$0]  %s20, 1024, %s22, [#allocation3], 64, 64, 4
    $region13: #{tpu_custom_call.1} parent=1 // pred_fallthru
      _
    // Predicated region
    $region14: #{tpu_custom_call.1} parent=1 // pred_check
      _
    $region15: #{tpu_custom_call.1} parent=1 // pred_check_branch
      %29 = sbr.rel (0) target = $region17
    $region16: #{tpu_custom_call.1} parent=1 // pred_region
      _
    $region17: #{tpu_custom_call.1} parent=1 // pred_fallthru
      _
    // Predicated region
    $region18: #{tpu_custom_call.1} parent=1 // pred_check
      _
    $region19: #{tpu_custom_call.1} parent=1 // pred_check_branch
      %31 = sbr.rel (0) target = $region21
    $region20: #{tpu_custom_call.1} parent=1 // pred_region
      %33 = dma.done [#allocation3], 1024
    $region21: #{tpu_custom_call.1} parent=1 // pred_fallthru
      _
    %v35 = vld [vmem:[%s0] sm:$0xf]
    %v36 = vld [vmem:[%s1] sm:$0x3]
    %vm37 = vcmask 31744
    %v39 = vsel %vm37, %v35, 0
    %vm41 = vcmask 1041408
    %v43 = vsel %vm41, %v36, 0
    %45 = vmatpush.bf16.msra.mxu0 0
    %46 = vmatpush.bf16.msra.mxu0 0
    %47 = vmatpush.bf16.msra.mxu0 0
    %48 = vmatpush.bf16.msra.mxu0 0
    %49 = vmatpush.bf16.msra.mxu0 0
    %50 = vmatpush.bf16.msra.mxu0 0
    %51 = vmatpush.bf16.msra.mxu0 0
    %52 = vmatpush.bf16.msra.mxu0 %v43
    %53 = vmatmul.bf16.gmra.mxu0 %v39
    %v54 = vpop.f32.mrf.mxu0
    %v55 = vadd.f32 0.0, %v54
    %v56 = vpop.f32.mrf.mxu0
    %57 = vdwg.mxu0
    %v58 = vpack.c.bf16 %v55, %v55
    %v59 = vld [vmem:[#allocation2] sm:$0xf]
    %v60 = vld [vmem:[#allocation2 + $0x4] sm:$0xf]
    %v61 = vld [vmem:[#allocation2 + $0x8] sm:$0xf]
    %v62 = vld [vmem:[#allocation2 + $0xc] sm:$0xf]
    %v63 = vld [vmem:[#allocation2 + $0x10] sm:$0xf]
    %v64 = vld [vmem:[#allocation2 + $0x14] sm:$0xf]
    %v65 = vld [vmem:[#allocation2 + $0x18] sm:$0xf]
    %v66 = vld [vmem:[#allocation2 + $0x1c] sm:$0xf]
    %v67 = vld [vmem:[#allocation2 + $0x20] sm:$0xf]
    %v68 = vld [vmem:[#allocation2 + $0x24] sm:$0xf]
    %v69 = vld [vmem:[#allocation2 + $0x28] sm:$0xf]
    %v70 = vld [vmem:[#allocation2 + $0x2c] sm:$0xf]
    %v71 = vld [vmem:[#allocation2 + $0x30] sm:$0xf]
    %v72 = vld [vmem:[#allocation2 + $0x34] sm:$0xf]
    %v73 = vld [vmem:[#allocation2 + $0x38] sm:$0xf]
    %v74 = vld [vmem:[#allocation2 + $0x3c] sm:$0xf]
    %v75 = vld [vmem:[%s3] sm:$0x1]
    %v77 = vperm.slane %v75, 0
    %v95 = vunpack.c.l.b16 %v59
    %v96 = vunpack.c.l.b16 %v60
    %v97 = vunpack.c.l.b16 %v61
    %v98 = vunpack.c.l.b16 %v62
    %v99 = vunpack.c.l.b16 %v63
    %v100 = vunpack.c.l.b16 %v64
    %v101 = vunpack.c.l.b16 %v65
    %v102 = vunpack.c.l.b16 %v66
    %v103 = vunpack.c.l.b16 %v67
    %v104 = vunpack.c.l.b16 %v68
    %v105 = vunpack.c.l.b16 %v69
    %v106 = vunpack.c.l.b16 %v70
    %v107 = vunpack.c.l.b16 %v71
    %v108 = vunpack.c.l.b16 %v72
    %v109 = vunpack.c.l.b16 %v73
    %v110 = vunpack.c.l.b16 %v74
    %v111 = vpack.c.b16 %v96, %v95
    %v112 = vpack.c.b16 %v98, %v97
    %v113 = vpack.c.b16 %v100, %v99
    %v114 = vpack.c.b16 %v102, %v101
    %v115 = vpack.c.b16 %v104, %v103
    %v116 = vpack.c.b16 %v106, %v105
    %v117 = vpack.c.b16 %v108, %v107
    %v118 = vpack.c.b16 %v110, %v109
    %127 = vmatpush.bf16.xpose.msra.mxu0 %v118
    %128 = vmatpush.bf16.xpose.msra.mxu0 %v117
    %129 = vmatpush.bf16.xpose.msra.mxu0 %v116
    %130 = vmatpush.bf16.xpose.msra.mxu0 %v115
    %131 = vmatpush.bf16.xpose.msra.mxu0 %v114
    %132 = vmatpush.bf16.xpose.msra.mxu0 %v113
    %133 = vmatpush.bf16.xpose.msra.mxu0 %v112
    %134 = vmatpush.bf16.xpose.msra.mxu0 %v111
    %135 = vmatmul.bf16.gmra.mxu0 %v58
    %v136 = vpop.f32.mrf.mxu0
    %v137 = vadd.f32 %v77, %v136
    %v138 = vpop.f32.mrf.mxu0
    %139 = vdwg.mxu0
    %v140 = vmul.f32 %v137, %v137
    %141 = vadd.xlane.f32.xlu0 %v140
    %v142 = vpop.xlane.xlu0 %141
    %v143 = vmax.f32 %v142, 1e-24
    %v144 = vrsqrt.pop %v143
    %v145 = vmul.f32 %v144, %v143
    %v146 = vmul.f32 %v145, %v144
    %v147 = vmul.f32 0.5, %v146
    %v148 = vsub.f32 1.5, %v147
    %v149 = vmul.f32 %v144, %v148
    %vm150 = vweird.f32 %v143
    %vm151 = vweird.f32 %v144
    %vm152 = vmor %vm150, %vm151
    %v153 = vsel %vm152, %v144, %v149
    %v154 = vmul.f32 %v137, %v153
    %155 = vst [vmem:[#allocation5] sm:$0xff] %v154
    // Predicated region
    $region22: #{tpu_custom_call.1} parent=1 // pred_check
      _
    $region23: #{tpu_custom_call.1} parent=1 // pred_check_branch
      %157 = sbr.rel (0) target = $region25
    $region24: #{tpu_custom_call.1} parent=1 // pred_region
      %159 = vsyncadd [#allocation4], 0
      %s161 = sshll.u32 [#allocation5], 4
      %s162 = int_to_ptr.vmem [resolvable:$true] %s161
      %s163 = sshll.u32 %s4, 4
      %s164 = int_to_ptr.hbm [resolvable:$true] %s163
      %166 = dma.vmem_to_hbm [thread:$0]  %s162, 128, %s164, [#allocation4]
    $region25: #{tpu_custom_call.1} parent=1 // pred_fallthru
      _
    // Predicated region
    $region26: #{tpu_custom_call.1} parent=1 // pred_check
      _
    $region27: #{tpu_custom_call.1} parent=1 // pred_check_branch
      %168 = sbr.rel (0) target = $region29
    $region28: #{tpu_custom_call.1} parent=1 // pred_region
      %170 = dma.done [#allocation4], 128
    $region29: #{tpu_custom_call.1} parent=1 // pred_fallthru
      _
    %171 = vsyncpa [#allocation3], 1
    %172 = vsyncpa [#allocation4], 1

</llo_original>
